<compile_context>
chip_gen: v6e
topology: v6e:2x2x1
jax: 0.10.0
libtpu: 0.0.40
codegen_flags: <defaults>
</compile_context>

<pallas_src>
import functools

import jax
import jax.numpy as jnp
from jax.experimental import pallas as pl
from jax.experimental.pallas import tpu as pltpu


def policy_layer_kernel(x_ref, w1_ref, b1_ref, w2_ref, b2_ref, out_ref):
    """Fused: out = relu(x @ W1 + b1) @ W2 + b2 for one batch tile."""
    x = x_ref[...]                                          # (TILE_B, F)
    # comb_layer1 + ReLU (MXU matmul, f32 accumulate; bias/ReLU on VPU)
    h = jnp.dot(x, w1_ref[...], preferred_element_type=jnp.float32)
    h = jnp.maximum(h + b1_ref[...], 0.0)                   # (TILE_B, F) f32
    # action_layer (cast back to weight dtype so bf16 weights hit the MXU natively)
    logits = jnp.dot(h.astype(w2_ref.dtype), w2_ref[...],
                     preferred_element_type=jnp.float32)
    logits = logits + b2_ref[...]                           # (TILE_B, A_pad)
    out_ref[...] = logits.astype(out_ref.dtype)


def _round_up(x, m):
    return ((x + m - 1) // m) * m


@functools.partial(jax.jit, static_argnames=("tile_b",))
def policy_layer_forward(features, w1, b1, w2, b2, *, tile_b=256):
    """features: (B, F). w1: (F, F), b1: (F,), w2: (F, A), b2: (A,).

    Returns action_logits: (B, A).
    """
    B, F = features.shape
    A = w2.shape[1]

    # ---- lane-dense output: pad action dim up to a multiple of 128 ----------
    A_pad = _round_up(max(A, 128), 128)
    if A_pad != A:
        w2 = jnp.pad(w2, ((0, 0), (0, A_pad - A)))
        b2 = jnp.pad(b2, (0, A_pad - A))

    # ---- batch tiling: pick a tile that's a multiple of 8 and pad B ---------
    tb = min(tile_b, _round_up(B, 8))
    tb = _round_up(tb, 8)
    B_pad = _round_up(B, tb)
    if B_pad != B:
        features = jnp.pad(features, ((0, B_pad - B), (0, 0)))

    b1_2d = b1.reshape(1, F)
    b2_2d = b2.reshape(1, A_pad)

    grid = (B_pad // tb,)

    dtype_bytes = jnp.dtype(features.dtype).itemsize
    cost = pl.CostEstimate(
        flops=2 * B_pad * F * F + 2 * B_pad * F * A_pad,
        transcendentals=0,
        bytes_accessed=dtype_bytes * (B_pad * F + F * F + F + F * A_pad
                                      + A_pad + B_pad * A_pad),
    )

    out_padded = pl.pallas_call(
        policy_layer_kernel,
        out_shape=jax.ShapeDtypeStruct((B_pad, A_pad), features.dtype),
        grid_spec=pltpu.PrefetchScalarGridSpec(
            num_scalar_prefetch=0,
            grid=grid,
            in_specs=[
                pl.BlockSpec((tb, F), lambda i: (i, 0)),        # x tile
                pl.BlockSpec((F, F), lambda i: (0, 0)),         # W1 (resident)
                pl.BlockSpec((1, F), lambda i: (0, 0)),         # b1 (resident)
                pl.BlockSpec((F, A_pad), lambda i: (0, 0)),     # W2 (resident)
                pl.BlockSpec((1, A_pad), lambda i: (0, 0)),     # b2 (resident)
            ],
            out_specs=pl.BlockSpec((tb, A_pad), lambda i: (i, 0)),
        ),
        compiler_params=pltpu.CompilerParams(
            dimension_semantics=("parallel",),   # megacore-shard batch on v7x
            vmem_limit_bytes=32 << 20,           # explicit; safe on v5e/v6e/v7x
        ),
        cost_estimate=cost,
    )(features, w1, b1_2d, w2, b2_2d)

    # Slice away batch / action padding.
    return out_padded[:B, :A]


def init_params(key, model_features, num_actions, dtype=jnp.float32):
    """Deterministic synthetic parameters (shapes match nn.Linear in the module)."""
    k1, k2, k3, k4 = jax.random.split(key, 4)
    bound = 1.0 / (model_features ** 0.5)
    # nn.Linear(model_features, model_features) -> stored (in, out)
    w1 = jax.random.uniform(k1, (model_features, model_features), dtype, -bound, bound)
    b1 = jax.random.uniform(k2, (model_features,), dtype, -bound, bound)
    # nn.Linear(model_features, num_actions) -> stored (in, out)
    w2 = jax.random.uniform(k3, (model_features, num_actions), dtype, -bound, bound)
    b2 = jax.random.uniform(k4, (num_actions,), dtype, -bound, bound)
    return w1, b1, w2, b2


if __name__ == "__main__":
    # Small shapes consistent with the module's forward.
    batch = 8
    model_features = 32
    num_targets = 4       # unused by forward (kept for parity with module signature)
    num_actions = 16

    key = jax.random.PRNGKey(0)
    kx, kp = jax.random.split(key)
    features = jax.random.normal(kx, (batch, model_features), jnp.float32)
    w1, b1, w2, b2 = init_params(kp, model_features, num_actions)

    out = policy_layer_forward(features, w1, b1, w2, b2)
    out = jax.block_until_ready(out)

    # Pure-JAX reference check of forward semantics.
    ref = jnp.maximum(features @ w1 + b1, 0.0) @ w2 + b2
    assert out.shape == (batch, num_actions)
    assert jnp.allclose(out, ref, atol=1e-5, rtol=1e-5)

    print("KERNEL_OK")
</pallas_src>

<mosaic_0001>
module attributes {stable_mosaic.version = 11 : i64} {
  func.func @policy_layer_kernel(%arg0: i32, %arg1: memref<8x32xf32, #tpu.memory_space<vmem>>, %arg2: memref<32x32xf32, #tpu.memory_space<vmem>>, %arg3: memref<1x32xf32, #tpu.memory_space<vmem>>, %arg4: memref<32x128xf32, #tpu.memory_space<vmem>>, %arg5: memref<1x128xf32, #tpu.memory_space<vmem>>, %arg6: memref<8x128xf32, #tpu.memory_space<vmem>>) attributes {dimension_semantics = [#tpu.dimension_semantics<parallel>], iteration_bounds = array<i64: 1>, scalar_prefetch = 0 : i64, scratch_operands = 0 : i64, tpu.core_type = #tpu.core_type<tc>, window_params = [{transform_indices = @transform_0, window_bounds = array<i64: 8, 32>}, {pipeline_mode = #tpu.pipeline_mode<synchronous>, transform_indices = @transform_1, window_bounds = array<i64: 32, 32>}, {pipeline_mode = #tpu.pipeline_mode<synchronous>, transform_indices = @transform_2, window_bounds = array<i64: 1, 32>}, {pipeline_mode = #tpu.pipeline_mode<synchronous>, transform_indices = @transform_3, window_bounds = array<i64: 32, 128>}, {pipeline_mode = #tpu.pipeline_mode<synchronous>, transform_indices = @transform_4, window_bounds = array<i64: 1, 128>}, {transform_indices = @transform_5, window_bounds = array<i64: 8, 128>}]} {
    %c0 = arith.constant 0 : index
    %c0_0 = arith.constant 0 : index
    %0 = vector.load %arg1[%c0, %c0_0] : memref<8x32xf32, #tpu.memory_space<vmem>>, vector<8x32xf32>
    %c0_1 = arith.constant 0 : index
    %c0_2 = arith.constant 0 : index
    %1 = vector.load %arg2[%c0_1, %c0_2] : memref<32x32xf32, #tpu.memory_space<vmem>>, vector<32x32xf32>
    %cst = arith.constant dense<0.000000e+00> : vector<8x32xf32>
    %2 = tpu.matmul %0, %1, %cst {dimension_numbers = #tpu.dot_dimension_numbers<[1], [0], [0], [1], [0, 0, 1, 1], [], []>} : vector<8x32xf32>, vector<32x32xf32>, vector<8x32xf32> -> vector<8x32xf32>
    %c0_3 = arith.constant 0 : index
    %c0_4 = arith.constant 0 : index
    %3 = vector.load %arg3[%c0_3, %c0_4] : memref<1x32xf32, #tpu.memory_space<vmem>>, vector<1x32xf32>
    %4 = vector.broadcast %3 : vector<1x32xf32> to vector<8x32xf32>
    %5 = arith.addf %2, %4 : vector<8x32xf32>
    %cst_5 = arith.constant 0.000000e+00 : f32
    %6 = vector.broadcast %cst_5 : f32 to vector<8x32xf32>
    %7 = arith.maximumf %5, %6 : vector<8x32xf32>
    %c0_6 = arith.constant 0 : index
    %c0_7 = arith.constant 0 : index
    %8 = vector.load %arg4[%c0_6, %c0_7] : memref<32x128xf32, #tpu.memory_space<vmem>>, vector<32x128xf32>
    %cst_8 = arith.constant dense<0.000000e+00> : vector<8x128xf32>
    %9 = tpu.matmul %7, %8, %cst_8 {dimension_numbers = #tpu.dot_dimension_numbers<[1], [0], [0], [1], [0, 0, 1, 1], [], []>} : vector<8x32xf32>, vector<32x128xf32>, vector<8x128xf32> -> vector<8x128xf32>
    %c0_9 = arith.constant 0 : index
    %c0_10 = arith.constant 0 : index
    %10 = vector.load %arg5[%c0_9, %c0_10] : memref<1x128xf32, #tpu.memory_space<vmem>>, vector<1x128xf32>
    %11 = vector.broadcast %10 : vector<1x128xf32> to vector<8x128xf32>
    %12 = arith.addf %9, %11 : vector<8x128xf32>
    %c0_11 = arith.constant 0 : index
    %c0_12 = arith.constant 0 : index
    %13 = vector.load %arg6[%c0_11, %c0_12] : memref<8x128xf32, #tpu.memory_space<vmem>>, vector<8x128xf32>
    tpu.vector_store %arg6[%c0_11, %c0_12], %12 {strides = array<i32>} : memref<8x128xf32, #tpu.memory_space<vmem>>, vector<8x128xf32>,
    return
  }
  func.func @transform_0(%arg0: i32) -> (i32, i32) {
    %c0_i32 = arith.constant 0 : i32
    %c0_i32_0 = arith.constant 0 : i32
    return %arg0, %c0_i32 : i32, i32
  }
  func.func @transform_1(%arg0: i32) -> (i32, i32) {
    %c0_i32 = arith.constant 0 : i32
    %c0_i32_0 = arith.constant 0 : i32
    %c0_i32_1 = arith.constant 0 : i32
    return %c0_i32, %c0_i32_0 : i32, i32
  }
  func.func @transform_2(%arg0: i32) -> (i32, i32) {
    %c0_i32 = arith.constant 0 : i32
    %c0_i32_0 = arith.constant 0 : i32
    %c0_i32_1 = arith.constant 0 : i32
    return %c0_i32, %c0_i32_0 : i32, i32
  }
  func.func @transform_3(%arg0: i32) -> (i32, i32) {
    %c0_i32 = arith.constant 0 : i32
    %c0_i32_0 = arith.constant 0 : i32
    %c0_i32_1 = arith.constant 0 : i32
    return %c0_i32, %c0_i32_0 : i32, i32
  }
  func.func @transform_4(%arg0: i32) -> (i32, i32) {
    %c0_i32 = arith.constant 0 : i32
    %c0_i32_0 = arith.constant 0 : i32
    %c0_i32_1 = arith.constant 0 : i32
    return %c0_i32, %c0_i32_0 : i32, i32
  }
  func.func @transform_5(%arg0: i32) -> (i32, i32) {
    %c0_i32 = arith.constant 0 : i32
    %c0_i32_0 = arith.constant 0 : i32
    return %arg0, %c0_i32 : i32, i32
  }
}

</mosaic_0001>

<llo_original>
// kernel: policy_layer_forward.1
$region0: #{policy_layer_forward.1}
  #allocation0 [shape = 'u32[]', space=smem, size = 0x4, offset = 0x4, fixed_abs, tag = 'smem constant byte address 0x4 - core index']
  #allocation1 [shape = 'u32[144,128]{1,0:T(1,128)}', space=vmem, size = 0x12000, scoped, tag = 'internal scratch']
  %s0 = inlined_call_operand.vmem [shape: f32[8,32], index: 0, kind: input, shape index: {}]
  %s1 = inlined_call_operand.vmem [shape: f32[32,32], index: 1, kind: input, shape index: {}]
  %s2 = inlined_call_operand.vmem [shape: f32[1,32], index: 2, kind: input, shape index: {}]
  %s3 = inlined_call_operand.vmem [shape: f32[32,128], index: 3, kind: input, shape index: {}]
  %s4 = inlined_call_operand.vmem [shape: f32[1,128], index: 4, kind: input, shape index: {}]
  %s5 = inlined_call_operand.hbm [shape: f32[8,128], index: 5, kind: output, shape index: {}]
  %s6 = sld [smem:[#allocation0]]
  $region30: #{policy_layer_forward.1} parent=0
    _
  %s8 = ssub.s32 1, %s6
  %s9 = scalar_select 0, %s8, %s6
  $region1: #{policy_layer_forward.1} parent=0
    #allocation2 [shape = 'u8[4096]{0}', space=vmem, size = 0x1000, scoped, tag = 'output window, operand 0, single buffered']
    #allocation3 [shape = 's32[1]{0}', space=sflag, size = 0x4, scoped, tag = 'scoped memory for policy_layer_forward.1']
    %10 = vsyncpa [#allocation3], 0
    // Predicated region
    $region2: #{policy_layer_forward.1} parent=1 // pred_check
      _
    $region3: #{policy_layer_forward.1} parent=1 // pred_check_branch
      %12 = sbr.rel (0) target = $region5
    $region4: #{policy_layer_forward.1} parent=1 // pred_region
      _
    $region5: #{policy_layer_forward.1} parent=1 // pred_fallthru
      _
    // Predicated region
    $region6: #{policy_layer_forward.1} parent=1 // pred_check
      _
    $region7: #{policy_layer_forward.1} parent=1 // pred_check_branch
      %14 = sbr.rel (0) target = $region9
    $region8: #{policy_layer_forward.1} parent=1 // pred_region
      _
    $region9: #{policy_layer_forward.1} parent=1 // pred_fallthru
      _
    // Predicated region
    $region10: #{policy_layer_forward.1} parent=1 // pred_check
      _
    $region11: #{policy_layer_forward.1} parent=1 // pred_check_branch
      %16 = sbr.rel (0) target = $region13
    $region12: #{policy_layer_forward.1} parent=1 // pred_region
      _
    $region13: #{policy_layer_forward.1} parent=1 // pred_fallthru
      _
    // Predicated region
    $region14: #{policy_layer_forward.1} parent=1 // pred_check
      _
    $region15: #{policy_layer_forward.1} parent=1 // pred_check_branch
      %18 = sbr.rel (0) target = $region17
    $region16: #{policy_layer_forward.1} parent=1 // pred_region
      _
    $region17: #{policy_layer_forward.1} parent=1 // pred_fallthru
      _
    // Predicated region
    $region18: #{policy_layer_forward.1} parent=1 // pred_check
      _
    $region19: #{policy_layer_forward.1} parent=1 // pred_check_branch
      %20 = sbr.rel (0) target = $region21
    $region20: #{policy_layer_forward.1} parent=1 // pred_region
      _
    $region21: #{policy_layer_forward.1} parent=1 // pred_fallthru
      _
    %v21 = vld [vmem:[%s0] sm:$0xff]
    %v22 = vld [vmem:[%s1] sm:$0xff]
    %v23 = vld [vmem:[%s1 + $0x8] sm:$0xff]
    %v24 = vld [vmem:[%s1 + $0x10] sm:$0xff]
    %v25 = vld [vmem:[%s1 + $0x18] sm:$0xff]
    %v26 = vld [vmem:[%s2] sm:$0x1]
    %v28 = vlaneseq
    %v29 = vshrl.u32 %v28, 7
    %v30 = vsub.s32 0, %v29
    %v31 = vrot.slane %v26, %v30
    %vm33 = vcmask 261120
    %v35 = vsel %vm33, %v21, 0
    %37 = vmatprep.subr.mxu0 0.0
    %38 = vmatpush1.msra.mxu0 0.0
    %39 = vmatprep.subr.mxu0 0.0
    %40 = vmatpush1.msra.mxu0 0.0
    %41 = vmatprep.subr.mxu0 0.0
    %42 = vmatpush1.msra.mxu0 0.0
    %43 = vmatprep.subr.mxu0 0.0
    %44 = vmatpush1.msra.mxu0 0.0
    %45 = vmatprep.subr.mxu0 0.0
    %46 = vmatpush1.msra.mxu0 0.0
    %47 = vmatprep.subr.mxu0 0.0
    %48 = vmatpush1.msra.mxu0 0.0
    %49 = vmatprep.subr.mxu0 0.0
    %50 = vmatpush1.msra.mxu0 0.0
    %51 = vmatprep.subr.mxu0 0.0
    %52 = vmatpush1.msra.mxu0 0.0
    %53 = vmatprep.subr.mxu0 0.0
    %54 = vmatpush1.msra.mxu0 0.0
    %55 = vmatprep.subr.mxu0 0.0
    %56 = vmatpush1.msra.mxu0 0.0
    %57 = vmatprep.subr.mxu0 0.0
    %58 = vmatpush1.msra.mxu0 0.0
    %59 = vmatprep.subr.mxu0 0.0
    %60 = vmatpush1.msra.mxu0 0.0
    %61 = vmatprep.subr.mxu0 0.0
    %62 = vmatpush1.msra.mxu0 %v25
    %63 = vmatprep.subr.mxu0 0.0
    %64 = vmatpush1.msra.mxu0 %v24
    %65 = vmatprep.subr.mxu0 0.0
    %66 = vmatpush1.msra.mxu0 %v23
    %67 = vmatprep.subr.mxu0 0.0
    %68 = vmatpush1.msra.mxu0 %v22
    %69 = vmatprep.subr.mxu0 0.0
    %70 = vmatpush2.msra.mxu0 0.0
    %71 = vmatprep.subr.mxu0 0.0
    %72 = vmatpush2.msra.mxu0 0.0
    %73 = vmatprep.subr.mxu0 0.0
    %74 = vmatpush2.msra.mxu0 0.0
    %75 = vmatprep.subr.mxu0 0.0
    %76 = vmatpush2.msra.mxu0 0.0
    %77 = vmatprep.subr.mxu0 0.0
    %78 = vmatpush2.msra.mxu0 0.0
    %79 = vmatprep.subr.mxu0 0.0
    %80 = vmatpush2.msra.mxu0 0.0
    %81 = vmatprep.subr.mxu0 0.0
    %82 = vmatpush2.msra.mxu0 0.0
    %83 = vmatprep.subr.mxu0 0.0
    %84 = vmatpush2.msra.mxu0 0.0
    %85 = vmatprep.subr.mxu0 0.0
    %86 = vmatpush2.msra.mxu0 0.0
    %87 = vmatprep.subr.mxu0 0.0
    %88 = vmatpush2.msra.mxu0 0.0
    %89 = vmatprep.subr.mxu0 0.0
    %90 = vmatpush2.msra.mxu0 0.0
    %91 = vmatprep.subr.mxu0 0.0
    %92 = vmatpush2.msra.mxu0 0.0
    %93 = vmatprep.subr.mxu0 0.0
    %94 = vmatpush2.msra.mxu0 0.0
    %95 = vmatprep.subr.mxu0 0.0
    %96 = vmatpush2.msra.mxu0 0.0
    %97 = vmatprep.subr.mxu0 0.0
    %98 = vmatpush2.msra.mxu0 0.0
    %99 = vmatprep.subr.mxu0 0.0
    %100 = vmatpush2.msra.mxu0 0.0
    %101 = vmatprep.mubr.f32.mxu0 0.0
    %102 = vmatmul.mubr.f32.gmra.mxu0 %v35
    %v103 = vpop.f32.mrf.mxu0
    %v104 = vadd.f32 %v31, %v103
    %v105 = vpop.f32.mrf.mxu0
    %106 = vdwg.mxu0
    %v107 = vmax.f32 %v104, 0.0
    %v108 = vld [vmem:[%s3] sm:$0xff]
    %v109 = vld [vmem:[%s3 + $0x8] sm:$0xff]
    %v110 = vld [vmem:[%s3 + $0x10] sm:$0xff]
    %v111 = vld [vmem:[%s3 + $0x18] sm:$0xff]
    %v112 = vld [vmem:[%s4] sm:$0x1]
    %v114 = vlaneseq
    %v115 = vshrl.u32 %v114, 7
    %v116 = vsub.s32 0, %v115
    %v117 = vrot.slane %v112, %v116
    %v120 = vsel %vm33, %v107, 0
    %122 = vmatprep.subr.mxu0 0.0
    %123 = vmatpush1.msra.mxu0 0.0
    %124 = vmatprep.subr.mxu0 0.0
    %125 = vmatpush1.msra.mxu0 0.0
    %126 = vmatprep.subr.mxu0 0.0
    %127 = vmatpush1.msra.mxu0 0.0
    %128 = vmatprep.subr.mxu0 0.0
    %129 = vmatpush1.msra.mxu0 0.0
    %130 = vmatprep.subr.mxu0 0.0
    %131 = vmatpush1.msra.mxu0 0.0
    %132 = vmatprep.subr.mxu0 0.0
    %133 = vmatpush1.msra.mxu0 0.0
    %134 = vmatprep.subr.mxu0 0.0
    %135 = vmatpush1.msra.mxu0 0.0
    %136 = vmatprep.subr.mxu0 0.0
    %137 = vmatpush1.msra.mxu0 0.0
    %138 = vmatprep.subr.mxu0 0.0
    %139 = vmatpush1.msra.mxu0 0.0
    %140 = vmatprep.subr.mxu0 0.0
    %141 = vmatpush1.msra.mxu0 0.0
    %142 = vmatprep.subr.mxu0 0.0
    %143 = vmatpush1.msra.mxu0 0.0
    %144 = vmatprep.subr.mxu0 0.0
    %145 = vmatpush1.msra.mxu0 0.0
    %146 = vmatprep.subr.mxu0 0.0
    %147 = vmatpush1.msra.mxu0 %v111
    %148 = vmatprep.subr.mxu0 0.0
    %149 = vmatpush1.msra.mxu0 %v110
    %150 = vmatprep.subr.mxu0 0.0
    %151 = vmatpush1.msra.mxu0 %v109
    %152 = vmatprep.subr.mxu0 0.0
    %153 = vmatpush1.msra.mxu0 %v108
    %154 = vmatprep.subr.mxu0 0.0
    %155 = vmatpush2.msra.mxu0 0.0
    %156 = vmatprep.subr.mxu0 0.0
    %157 = vmatpush2.msra.mxu0 0.0
    %158 = vmatprep.subr.mxu0 0.0
    %159 = vmatpush2.msra.mxu0 0.0
    %160 = vmatprep.subr.mxu0 0.0
    %161 = vmatpush2.msra.mxu0 0.0
    %162 = vmatprep.subr.mxu0 0.0
    %163 = vmatpush2.msra.mxu0 0.0
    %164 = vmatprep.subr.mxu0 0.0
    %165 = vmatpush2.msra.mxu0 0.0
    %166 = vmatprep.subr.mxu0 0.0
    %167 = vmatpush2.msra.mxu0 0.0
    %168 = vmatprep.subr.mxu0 0.0
    %169 = vmatpush2.msra.mxu0 0.0
    %170 = vmatprep.subr.mxu0 0.0
    %171 = vmatpush2.msra.mxu0 0.0
    %172 = vmatprep.subr.mxu0 0.0
    %173 = vmatpush2.msra.mxu0 0.0
    %174 = vmatprep.subr.mxu0 0.0
    %175 = vmatpush2.msra.mxu0 0.0
    %176 = vmatprep.subr.mxu0 0.0
    %177 = vmatpush2.msra.mxu0 0.0
    %178 = vmatprep.subr.mxu0 0.0
    %179 = vmatpush2.msra.mxu0 0.0
    %180 = vmatprep.subr.mxu0 0.0
    %181 = vmatpush2.msra.mxu0 0.0
    %182 = vmatprep.subr.mxu0 0.0
    %183 = vmatpush2.msra.mxu0 0.0
    %184 = vmatprep.subr.mxu0 0.0
    %185 = vmatpush2.msra.mxu0 0.0
    %186 = vmatprep.mubr.f32.mxu0 0.0
    %187 = vmatmul.mubr.f32.gmra.mxu0 %v120
    %v188 = vpop.f32.mrf.mxu0
    %v189 = vadd.f32 %v117, %v188
    %v190 = vpop.f32.mrf.mxu0
    %191 = vdwg.mxu0
    %192 = vst [vmem:[#allocation2] sm:$0xff] %v189
    // Predicated region
    $region22: #{policy_layer_forward.1} parent=1 // pred_check
      _
    $region23: #{policy_layer_forward.1} parent=1 // pred_check_branch
      %194 = sbr.rel (0) target = $region25
    $region24: #{policy_layer_forward.1} parent=1 // pred_region
      %s196 = ssub.s32 128, 128
      %197 = vsyncadd [#allocation3], %s196
      %s199 = sshll.u32 [#allocation2], 4
      %s200 = int_to_ptr.vmem [resolvable:$true] %s199
      %202 = dma.vmem_to_hbm [thread:$0]  %s200, 128, %s5, [#allocation3]
    $region25: #{policy_layer_forward.1} parent=1 // pred_fallthru
      _
    // Predicated region
    $region26: #{policy_layer_forward.1} parent=1 // pred_check
      _
    $region27: #{policy_layer_forward.1} parent=1 // pred_check_branch
      %204 = sbr.rel (0) target = $region29
    $region28: #{policy_layer_forward.1} parent=1 // pred_region
      %205 = dma.done [#allocation3], 128
    $region29: #{policy_layer_forward.1} parent=1 // pred_fallthru
      _
    %206 = vsyncpa [#allocation3], 1

</llo_original>
